<compile_context>
chip_gen: v7x
topology: tpu7x:2x2x1
jax: 0.10.0
libtpu: 0.0.40
codegen_flags: <defaults>
</compile_context>

<pallas_src>
import functools

import jax
import jax.numpy as jnp
from jax.experimental import pallas as pl
from jax.experimental.pallas import tpu as pltpu


_STEP_OVERHEAD_BYTES = 450_000   # ~0.35 us grid-step overhead expressed as HBM bytes


def _round_up(x, m):
    return ((x + m - 1) // m) * m


def _vmem_budget():
    """Per-generation VMEM budgeting (v5e/v6e: 128 MiB, v7x: 64 MiB)."""
    try:
        cap = int(getattr(pltpu.get_tpu_info(), "vmem_capacity_bytes"))
    except Exception:
        cap = 64 * 1024 * 1024           # conservative (v7x per-TensorCore)
    limit = int(cap * 3 // 4)            # scoped VMEM limit for the kernel
    budget = int(limit * 85 // 100)      # working-set budget with headroom
    return limit, budget


def _divisor_tiles(total, unit, cap):
    """Multiples of `unit` that divide `total`, capped at `cap` (ascending)."""
    out = []
    t = unit
    hi = min(total, cap)
    while t <= hi:
        if total % t == 0:
            out.append(t)
        t += unit
    return out or [unit]


# ---------------------------------------------------------------------------
# Kernels
# ---------------------------------------------------------------------------
def _embed_kernel_fullk(x_ref, w_ref, b_ref, o_ref, *, compute_dtype):
    """One (tm, tn) output tile; the whole K dimension is in-block."""
    x = x_ref[...].astype(compute_dtype)       # in-kernel cast hides under MXU
    acc = jnp.dot(x, w_ref[...], preferred_element_type=jnp.float32)
    o_ref[...] = (acc + b_ref[...]).astype(o_ref.dtype)


def _embed_kernel_kloop(x_ref, w_ref, b_ref, o_ref, acc_ref, *, compute_dtype):
    """One (tm, tn) output tile, accumulating over the K grid axis (axis 2)."""
    k = pl.program_id(2)

    @pl.when(k == 0)
    def _():
        acc_ref[...] = jnp.zeros_like(acc_ref)

    x = x_ref[...].astype(compute_dtype)
    acc_ref[...] += jnp.dot(x, w_ref[...], preferred_element_type=jnp.float32)

    @pl.when(k == pl.num_programs(2) - 1)
    def _():
        o_ref[...] = (acc_ref[...] + b_ref[...]).astype(o_ref.dtype)


# ---------------------------------------------------------------------------
# One-time parameter preparation (do this at module init, not per call)
# ---------------------------------------------------------------------------
def prepare_embed_params(w_t, b, *, compute_dtype=jnp.bfloat16):
    """Cast + lane-pad the Linear parameters once.

    w_t : [K, N]  weight stored transposed relative to PyTorch's [N, K]
    b   : [N]     bias
    Returns (w_p [K, N_pad] compute_dtype, b_p [1, N_pad] f32, N).
    """
    K, N = w_t.shape
    N_pad = _round_up(N, 128)
    w_p = w_t.astype(compute_dtype)
    b_p = b.astype(jnp.float32).reshape(1, N)
    if N_pad != N:
        w_p = jnp.pad(w_p, ((0, 0), (0, N_pad - N)))
        b_p = jnp.pad(b_p, ((0, 0), (0, N_pad - N)))
    return w_p, b_p, N


# ---------------------------------------------------------------------------
# Tile planning for the full-K path
# ---------------------------------------------------------------------------
def _plan_fullk(M, K, N_pad, x_is, o_is, c_is, tm_max, tn_max, vmem_budget,
                w_buffers):
    """Pick (tm, tn, M_pad) minimizing estimated HBM traffic; None if no fit."""
    best_key, best = None, None
    tn_cands = _divisor_tiles(N_pad, 128, min(tn_max, N_pad))
    tm_hi = max(16, min(tm_max, _round_up(M, 16)))
    for tn in tn_cands:
        n_panels = N_pad // tn
        for tm in range(16, tm_hi + 1, 16):
            M_pad = _round_up(M, tm)
            m_tiles = M_pad // tm
            vmem = (2 * tm * K * x_is            # x tile (input dtype, dbl buf)
                    + tm * K * c_is              # in-kernel bf16 copy of x
                    + w_buffers * K * tn * c_is  # resident weight panel
                    + tm * tn * 4                # f32 matmul result
                    + 2 * tm * tn * o_is         # output tile (dbl buf)
                    + 2 * 8 * tn * 4)            # bias
            if vmem > vmem_budget:
                continue
            hbm = (n_panels * M_pad * K * x_is   # x streamed once per N panel
                   + N_pad * K * c_is            # W read once
                   + M_pad * N_pad * o_is        # output writeback
                   + n_panels * m_tiles * _STEP_OVERHEAD_BYTES)
            key = (hbm, n_panels * m_tiles, -tm)
            if best_key is None or key < best_key:
                best_key, best = key, (tm, tn, M_pad)
    return best


# ---------------------------------------------------------------------------
# Forward wrapper
# ---------------------------------------------------------------------------
def embed_forward(x, w_p, b_p, *, n_out=None, tm_max=256, tn_max=2048,
                  compute_dtype=jnp.bfloat16):
    """y = x @ W^T + b for the `Embed` module.

    x   : [..., K]      activations (leading dims flattened into M)
    w_p : [K, N_pad]    weight from prepare_embed_params (bf16, 128-padded N).
                        Unprepared f32 [K, N] also accepted (extra HBM pass).
    b_p : [1, N_pad]    bias from prepare_embed_params (or raw [N]).
    n_out : true embed_dim (defaults to padded width).
    """
    *lead, K = x.shape
    Kw, Nw = w_p.shape
    assert Kw == K, (Kw, K)

    # Accept unprepared params (prefer prepare_embed_params once at init).
    if w_p.dtype != compute_dtype or Nw % 128 != 0:
        if n_out is None:
            n_out = Nw
        N_pad = _round_up(Nw, 128)
        w_p = w_p.astype(compute_dtype)
        if N_pad != Nw:
            w_p = jnp.pad(w_p, ((0, 0), (0, N_pad - Nw)))
    else:
        N_pad = Nw
        if n_out is None:
            n_out = Nw
    b2 = b_p.reshape(1, -1).astype(jnp.float32)
    if b2.shape[1] != N_pad:
        b2 = jnp.pad(b2, ((0, 0), (0, N_pad - b2.shape[1])))

    M = 1
    for d in lead:
        M *= d
    out_dtype = x.dtype
    x_is = jnp.dtype(x.dtype).itemsize
    o_is = jnp.dtype(out_dtype).itemsize
    c_is = jnp.dtype(compute_dtype).itemsize

    vmem_limit, vmem_budget = _vmem_budget()
    x2 = x.reshape(M, K)

    kernel_fullk = functools.partial(_embed_kernel_fullk,
                                     compute_dtype=compute_dtype)
    kernel_kloop = functools.partial(_embed_kernel_kloop,
                                     compute_dtype=compute_dtype)

    # ------------------------------------------------------------------ full-K
    def run_fullk(plan, single_buffer_w):
        tm, tn, M_pad = plan
        n_panels = N_pad // tn
        m_tiles = M_pad // tm
        xp = x2 if M_pad == M else jnp.pad(x2, ((0, M_pad - M), (0, 0)))

        w_kwargs = dict(pipeline_mode=pl.Buffered(1)) if single_buffer_w else {}

        if n_panels == 1:
            # Single weight panel resident for the whole kernel; a 1-D grid
            # over M tiles keeps both v7x TensorCores busy.
            grid = (m_tiles,)
            in_specs = [
                pl.BlockSpec((tm, K), lambda i: (i, 0)),            # x tile
                pl.BlockSpec((K, tn), lambda i: (0, 0), **w_kwargs),  # W panel
                pl.BlockSpec((1, tn), lambda i: (0, 0)),            # bias
            ]
            out_specs = pl.BlockSpec((tm, tn), lambda i: (i, 0))
            dims = ("parallel",)
        else:
            # j outer so the (K, tn) weight panel is DMA'd once per panel.
            grid = (n_panels, m_tiles)
            in_specs = [
                pl.BlockSpec((tm, K), lambda j, i: (i, 0)),
                pl.BlockSpec((K, tn), lambda j, i: (0, j), **w_kwargs),
                pl.BlockSpec((1, tn), lambda j, i: (0, j)),
            ]
            out_specs = pl.BlockSpec((tm, tn), lambda j, i: (i, j))
            dims = ("parallel", "parallel")

        cost = pl.CostEstimate(
            flops=2 * M_pad * K * N_pad,
            transcendentals=0,
            bytes_accessed=(n_panels * M_pad * K * x_is   # x re-read per panel
                            + N_pad * K * c_is
                            + N_pad * 4
                            + M_pad * N_pad * o_is),
        )
        out = pl.pallas_call(
            kernel_fullk,
            out_shape=jax.ShapeDtypeStruct((M_pad, N_pad), out_dtype),
            grid_spec=pltpu.PrefetchScalarGridSpec(
                num_scalar_prefetch=0, grid=grid,
                in_specs=in_specs, out_specs=out_specs),
            compiler_params=pltpu.CompilerParams(
                dimension_semantics=dims, vmem_limit_bytes=vmem_limit),
            cost_estimate=cost,
        )(xp, w_p, b2)
        return out

    out = None
    plan = _plan_fullk(M, K, N_pad, x_is, o_is, c_is, tm_max, tn_max,
                       vmem_budget, w_buffers=1)
    if plan is not None:
        try:
            out = run_fullk(plan, single_buffer_w=True)
        except Exception:
            # pl.Buffered(1) rejected on this toolchain / device: re-plan with
            # a double-buffered weight panel and default pipelining.
            plan2 = _plan_fullk(M, K, N_pad, x_is, o_is, c_is, tm_max, tn_max,
                                vmem_budget, w_buffers=2)
            if plan2 is not None:
                out = run_fullk(plan2, single_buffer_w=False)

    # --------------------------------------------------------------- K-loop
    if out is None:
        # Rare path: K panel too large for VMEM even at tn=128.
        tm = min(tm_max, max(16, min(128, _round_up(M, 16))))
        tn_cands = _divisor_tiles(N_pad, 128, min(tn_max, N_pad))
        K_pad128 = _round_up(K, 128)
        tk_cands = [t for t in (4096, 2048, 1024, 512, 256, 128)
                    if t <= K_pad128] or [128]
        chosen = None
        for tk_try in tk_cands:                 # keep tk as large as fits ...
            for tn_try in reversed(tn_cands):   # ... shrink tn before tk
                vmem = (2 * tm * tk_try * x_is + tm * tk_try * c_is
                        + 2 * tk_try * tn_try * c_is + tm * tn_try * 4
                        + 2 * tm * tn_try * o_is + 2 * 8 * tn_try * 4)
                if vmem <= vmem_budget:
                    chosen = (tn_try, tk_try)
                    break
            if chosen is not None:
                break
        tn, tk = chosen
        K_pad = _round_up(K, tk)
        M_pad = _round_up(M, tm)

        xp = x2
        if (M_pad, K_pad) != (M, K):
            xp = jnp.pad(xp, ((0, M_pad - M), (0, K_pad - K)))
        wq = w_p
        if K_pad != K:
            # TODO(synk): rare path; per-call K-pad of the weight costs an
            # extra HBM pass (avoidable by preparing a K-padded weight at init).
            wq = jnp.pad(wq, ((0, K_pad - K), (0, 0)))

        cost = pl.CostEstimate(
            flops=2 * M_pad * K_pad * N_pad,
            transcendentals=0,
            bytes_accessed=((N_pad // tn) * M_pad * K_pad * x_is
                            + (M_pad // tm) * K_pad * N_pad * c_is
                            + N_pad * 4 + M_pad * N_pad * o_is),
        )
        out = pl.pallas_call(
            kernel_kloop,
            out_shape=jax.ShapeDtypeStruct((M_pad, N_pad), out_dtype),
            grid_spec=pltpu.PrefetchScalarGridSpec(
                num_scalar_prefetch=0,
                grid=(M_pad // tm, N_pad // tn, K_pad // tk),
                in_specs=[
                    pl.BlockSpec((tm, tk), lambda i, j, k: (i, k)),
                    pl.BlockSpec((tk, tn), lambda i, j, k: (k, j)),
                    pl.BlockSpec((1, tn), lambda i, j, k: (0, j)),
                ],
                out_specs=pl.BlockSpec((tm, tn), lambda i, j, k: (i, j)),
                scratch_shapes=[pltpu.VMEM((tm, tn), jnp.float32)],
            ),
            compiler_params=pltpu.CompilerParams(
                dimension_semantics=("parallel", "parallel", "arbitrary"),
                vmem_limit_bytes=vmem_limit),
            cost_estimate=cost,
        )(xp, wq, b2)

    out = out[:M, :n_out]
    return out.reshape(*lead, n_out)


if __name__ == "__main__":
    # Small shapes consistent with Embed(in_dim, embed_dim)
    B, S = 2, 8
    in_dim, embed_dim = 256, 128

    key = jax.random.PRNGKey(0)
    kx, kw, kb = jax.random.split(key, 3)

    x = jax.random.normal(kx, (B, S, in_dim), dtype=jnp.float32)
    # Weight stored as [in_dim, embed_dim] (i.e. W^T of PyTorch's [embed_dim, in_dim]).
    w_t = jax.random.normal(kw, (in_dim, embed_dim), dtype=jnp.float32) * 0.02
    b = jax.random.normal(kb, (embed_dim,), dtype=jnp.float32) * 0.02

    # One-time parameter prep ("module init"), then the per-call forward.
    w_p, b_p, n_out = prepare_embed_params(w_t, b)
    y = embed_forward(x, w_p, b_p, n_out=n_out)
    y = jax.block_until_ready(y)

    # Reference with the same bf16 operand rounding, f32 accumulation.
    xb = x.astype(jnp.bfloat16).astype(jnp.float32)
    wb = w_t.astype(jnp.bfloat16).astype(jnp.float32)
    y_ref = xb @ wb + b

    assert y.shape == (B, S, embed_dim)
    assert jnp.allclose(y, y_ref, atol=2e-2, rtol=2e-2), float(
        jnp.max(jnp.abs(y - y_ref)))

    print("KERNEL_OK")
</pallas_src>

<mosaic_0001>
module attributes {stable_mosaic.version = 11 : i64} {
  func.func @_embed_kernel_fullk(%arg0: i32, %arg1: memref<16x256xf32, #tpu.memory_space<vmem>>, %arg2: memref<256x128xbf16, #tpu.memory_space<vmem>>, %arg3: memref<1x128xf32, #tpu.memory_space<vmem>>, %arg4: memref<16x128xf32, #tpu.memory_space<vmem>>) attributes {dimension_semantics = [#tpu.dimension_semantics<parallel>], iteration_bounds = array<i64: 1>, scalar_prefetch = 0 : i64, scratch_operands = 0 : i64, tpu.core_type = #tpu.core_type<tc>, window_params = [{transform_indices = @transform_0, window_bounds = array<i64: 16, 256>}, {pipeline_mode = #tpu.pipeline_mode<synchronous>, transform_indices = @transform_1, window_bounds = array<i64: 256, 128>}, {pipeline_mode = #tpu.pipeline_mode<synchronous>, transform_indices = @transform_2, window_bounds = array<i64: 1, 128>}, {transform_indices = @transform_3, window_bounds = array<i64: 16, 128>}]} {
    %c0 = arith.constant 0 : index
    %c0_0 = arith.constant 0 : index
    %0 = vector.load %arg1[%c0, %c0_0] : memref<16x256xf32, #tpu.memory_space<vmem>>, vector<16x256xf32>
    %1 = arith.truncf %0 : vector<16x256xf32> to vector<16x256xbf16>
    %c0_1 = arith.constant 0 : index
    %c0_2 = arith.constant 0 : index
    %2 = vector.load %arg2[%c0_1, %c0_2] : memref<256x128xbf16, #tpu.memory_space<vmem>>, vector<256x128xbf16>
    %cst = arith.constant dense<0.000000e+00> : vector<16x128xf32>
    %3 = tpu.matmul %1, %2, %cst {dimension_numbers = #tpu.dot_dimension_numbers<[1], [0], [0], [1], [0, 0, 1, 1], [], []>} : vector<16x256xbf16>, vector<256x128xbf16>, vector<16x128xf32> -> vector<16x128xf32>
    %c0_3 = arith.constant 0 : index
    %c0_4 = arith.constant 0 : index
    %4 = vector.load %arg3[%c0_3, %c0_4] : memref<1x128xf32, #tpu.memory_space<vmem>>, vector<1x128xf32>
    %5 = vector.broadcast %4 : vector<1x128xf32> to vector<16x128xf32>
    %6 = arith.addf %3, %5 : vector<16x128xf32>
    %c0_5 = arith.constant 0 : index
    %c0_6 = arith.constant 0 : index
    %7 = vector.load %arg4[%c0_5, %c0_6] : memref<16x128xf32, #tpu.memory_space<vmem>>, vector<16x128xf32>
    tpu.vector_store %arg4[%c0_5, %c0_6], %6 {strides = array<i32>} : memref<16x128xf32, #tpu.memory_space<vmem>>, vector<16x128xf32>,
    return
  }
  func.func @transform_0(%arg0: i32) -> (i32, i32) {
    %c0_i32 = arith.constant 0 : i32
    %c0_i32_0 = arith.constant 0 : i32
    return %arg0, %c0_i32 : i32, i32
  }
  func.func @transform_1(%arg0: i32) -> (i32, i32) {
    %c0_i32 = arith.constant 0 : i32
    %c0_i32_0 = arith.constant 0 : i32
    %c0_i32_1 = arith.constant 0 : i32
    return %c0_i32, %c0_i32_0 : i32, i32
  }
  func.func @transform_2(%arg0: i32) -> (i32, i32) {
    %c0_i32 = arith.constant 0 : i32
    %c0_i32_0 = arith.constant 0 : i32
    %c0_i32_1 = arith.constant 0 : i32
    return %c0_i32, %c0_i32_0 : i32, i32
  }
  func.func @transform_3(%arg0: i32) -> (i32, i32) {
    %c0_i32 = arith.constant 0 : i32
    %c0_i32_0 = arith.constant 0 : i32
    return %arg0, %c0_i32 : i32, i32
  }
}

module attributes {stable_mosaic.version = 11 : i64} {
  func.func @_embed_kernel_fullk(%arg0: i32, %arg1: memref<16x256xf32, #tpu.memory_space<vmem>>, %arg2: memref<256x128xbf16, #tpu.memory_space<vmem>>, %arg3: memref<1x128xf32, #tpu.memory_space<vmem>>, %arg4: memref<16x128xf32, #tpu.memory_space<vmem>>) attributes {dimension_semantics = [#tpu.dimension_semantics<parallel>], iteration_bounds = array<i64: 1>, scalar_prefetch = 0 : i64, scratch_operands = 0 : i64, tpu.core_type = #tpu.core_type<tc>, window_params = [{transform_indices = @transform_0, window_bounds = array<i64: 16, 256>}, {pipeline_mode = #tpu.pipeline_mode<synchronous>, transform_indices = @transform_1, window_bounds = array<i64: 256, 128>}, {pipeline_mode = #tpu.pipeline_mode<synchronous>, transform_indices = @transform_2, window_bounds = array<i64: 1, 128>}, {transform_indices = @transform_3, window_bounds = array<i64: 16, 128>}]} {
    %c0 = arith.constant 0 : index
    %c0_0 = arith.constant 0 : index
    %0 = vector.load %arg1[%c0, %c0_0] : memref<16x256xf32, #tpu.memory_space<vmem>>, vector<16x256xf32>
    %1 = arith.truncf %0 : vector<16x256xf32> to vector<16x256xbf16>
    %c0_1 = arith.constant 0 : index
    %c0_2 = arith.constant 0 : index
    %2 = vector.load %arg2[%c0_1, %c0_2] : memref<256x128xbf16, #tpu.memory_space<vmem>>, vector<256x128xbf16>
    %cst = arith.constant dense<0.000000e+00> : vector<16x128xf32>
    %3 = tpu.matmul %1, %2, %cst {dimension_numbers = #tpu.dot_dimension_numbers<[1], [0], [0], [1], [0, 0, 1, 1], [], []>} : vector<16x256xbf16>, vector<256x128xbf16>, vector<16x128xf32> -> vector<16x128xf32>
    %c0_3 = arith.constant 0 : index
    %c0_4 = arith.constant 0 : index
    %4 = vector.load %arg3[%c0_3, %c0_4] : memref<1x128xf32, #tpu.memory_space<vmem>>, vector<1x128xf32>
    %5 = vector.broadcast %4 : vector<1x128xf32> to vector<16x128xf32>
    %6 = arith.addf %3, %5 : vector<16x128xf32>
    %c0_5 = arith.constant 0 : index
    %c0_6 = arith.constant 0 : index
    %7 = vector.load %arg4[%c0_5, %c0_6] : memref<16x128xf32, #tpu.memory_space<vmem>>, vector<16x128xf32>
    tpu.vector_store %arg4[%c0_5, %c0_6], %6 {strides = array<i32>} : memref<16x128xf32, #tpu.memory_space<vmem>>, vector<16x128xf32>,
    return
  }
  func.func @transform_0(%arg0: i32) -> (i32, i32) {
    %c0_i32 = arith.constant 0 : i32
    %c0_i32_0 = arith.constant 0 : i32
    return %arg0, %c0_i32 : i32, i32
  }
  func.func @transform_1(%arg0: i32) -> (i32, i32) {
    %c0_i32 = arith.constant 0 : i32
    %c0_i32_0 = arith.constant 0 : i32
    %c0_i32_1 = arith.constant 0 : i32
    return %c0_i32, %c0_i32_0 : i32, i32
  }
  func.func @transform_2(%arg0: i32) -> (i32, i32) {
    %c0_i32 = arith.constant 0 : i32
    %c0_i32_0 = arith.constant 0 : i32
    %c0_i32_1 = arith.constant 0 : i32
    return %c0_i32, %c0_i32_0 : i32, i32
  }
  func.func @transform_3(%arg0: i32) -> (i32, i32) {
    %c0_i32 = arith.constant 0 : i32
    %c0_i32_0 = arith.constant 0 : i32
    return %arg0, %c0_i32 : i32, i32
  }
}

</mosaic_0001>

<llo_original>
// kernel: tpu_custom_call.1
$region0: #{tpu_custom_call.1}
  #allocation0 [shape = 'u32[]', space=smem, size = 0x4, offset = 0x4, fixed_abs, tag = 'smem constant byte address 0x4 - core index']
  #allocation1 [shape = 'u32[144,128]{1,0:T(1,128)}', space=vmem, size = 0x12000, scoped, tag = 'internal scratch']
  %s0 = inlined_call_operand.hbm [shape: f32[16,256], index: 0, kind: input, shape index: {}]
  %s1 = inlined_call_operand.hbm [shape: bf16[256,128], index: 1, kind: input, shape index: {}]
  %s2 = inlined_call_operand.vmem [shape: f32[1,128], index: 2, kind: input, shape index: {}]
  %s3 = inlined_call_operand.hbm [shape: f32[16,128], index: 3, kind: output, shape index: {}]
  %s4 = sld [smem:[#allocation0]]
  $region30: #{tpu_custom_call.1} parent=0
    _
  %s6 = ssub.s32 1, %s4
  %s7 = scalar_select 0, %s6, %s4
  $region1: #{tpu_custom_call.1} parent=0
    #allocation2 [shape = 'u8[16384]{0}', space=vmem, size = 0x4000, scoped, tag = 'input window, operand 0, single buffered']
    #allocation3 [shape = 's32[1]{0}', space=sflag, size = 0x4, scoped, tag = 'scoped memory for tpu_custom_call.1']
    #allocation4 [shape = 's32[1]{0}', space=sflag, size = 0x4, scoped, tag = 'scoped memory for tpu_custom_call.1']
    #allocation5 [shape = 'u8[65536]{0}', space=vmem, size = 0x10000, scoped, tag = 'input window, operand 1, single buffered']
    #allocation6 [shape = 's32[1]{0}', space=sflag, size = 0x4, scoped, tag = 'scoped memory for tpu_custom_call.1']
    #allocation7 [shape = 'u8[8192]{0}', space=vmem, size = 0x2000, scoped, tag = 'output window, operand 0, single buffered']
    %8 = vsyncpa [#allocation3], 0
    %9 = vsyncpa [#allocation6], 0
    %10 = vsyncpa [#allocation4], 0
    // Predicated region
    $region2: #{tpu_custom_call.1} parent=1 // pred_check
      _
    $region3: #{tpu_custom_call.1} parent=1 // pred_check_branch
      %12 = sbr.rel (0) target = $region5
    $region4: #{tpu_custom_call.1} parent=1 // pred_region
      %s14 = ssub.s32 512, 512
      %15 = vsyncadd [#allocation3], %s14
      %s16 = sshll.u32 [#allocation2], 4
      %s17 = int_to_ptr.vmem [resolvable:$true] %s16
      %22 = dma.hbm_to_vmem [thread:$0]  %s0, 512, %s17, [#allocation3], 256, 256, 16
    $region5: #{tpu_custom_call.1} parent=1 // pred_fallthru
      _
    // Predicated region
    $region6: #{tpu_custom_call.1} parent=1 // pred_check
      _
    $region7: #{tpu_custom_call.1} parent=1 // pred_check_branch
      %24 = sbr.rel (0) target = $region9
    $region8: #{tpu_custom_call.1} parent=1 // pred_region
      %s26 = ssub.s32 2048, 2048
      %27 = vsyncadd [#allocation6], %s26
      %s28 = sshll.u32 [#allocation5], 4
      %s29 = int_to_ptr.vmem [resolvable:$true] %s28
      %34 = dma.hbm_to_vmem [thread:$0]  %s1, 2048, %s29, [#allocation6], 64, 64, 4
    $region9: #{tpu_custom_call.1} parent=1 // pred_fallthru
      _
    // Predicated region
    $region10: #{tpu_custom_call.1} parent=1 // pred_check
      _
    $region11: #{tpu_custom_call.1} parent=1 // pred_check_branch
      %36 = sbr.rel (0) target = $region13
    $region12: #{tpu_custom_call.1} parent=1 // pred_region
      _
    $region13: #{tpu_custom_call.1} parent=1 // pred_fallthru
      _
    // Predicated region
    $region14: #{tpu_custom_call.1} parent=1 // pred_check
      _
    $region15: #{tpu_custom_call.1} parent=1 // pred_check_branch
      %38 = sbr.rel (0) target = $region17
    $region16: #{tpu_custom_call.1} parent=1 // pred_region
      %39 = dma.done [#allocation3], 512
    $region17: #{tpu_custom_call.1} parent=1 // pred_fallthru
      _
    // Predicated region
    $region18: #{tpu_custom_call.1} parent=1 // pred_check
      _
    $region19: #{tpu_custom_call.1} parent=1 // pred_check_branch
      %41 = sbr.rel (0) target = $region21
    $region20: #{tpu_custom_call.1} parent=1 // pred_region
      %42 = dma.done [#allocation6], 2048
    $region21: #{tpu_custom_call.1} parent=1 // pred_fallthru
      _
    %v44 = vld [vmem:[#allocation2] sm:$0xff]
    %v45 = vld [vmem:[#allocation2 + $0x8] sm:$0xff]
    %v46 = vld [vmem:[#allocation2 + $0x10] sm:$0xff]
    %v47 = vld [vmem:[#allocation2 + $0x18] sm:$0xff]
    %v48 = vpack.c.bf16 %v46, %v44
    %v49 = vpack.c.bf16 %v47, %v45
    %v50 = vld [vmem:[#allocation5] sm:$0xf]
    %v51 = vld [vmem:[#allocation5 + $0x4] sm:$0xf]
    %v52 = vld [vmem:[#allocation5 + $0x8] sm:$0xf]
    %v53 = vld [vmem:[#allocation5 + $0xc] sm:$0xf]
    %v54 = vld [vmem:[#allocation5 + $0x10] sm:$0xf]
    %v55 = vld [vmem:[#allocation5 + $0x14] sm:$0xf]
    %v56 = vld [vmem:[#allocation5 + $0x18] sm:$0xf]
    %v57 = vld [vmem:[#allocation5 + $0x1c] sm:$0xf]
    %v58 = vld [vmem:[#allocation5 + $0x20] sm:$0xf]
    %v59 = vld [vmem:[#allocation5 + $0x24] sm:$0xf]
    %v60 = vld [vmem:[#allocation5 + $0x28] sm:$0xf]
    %v61 = vld [vmem:[#allocation5 + $0x2c] sm:$0xf]
    %v62 = vld [vmem:[#allocation5 + $0x30] sm:$0xf]
    %v63 = vld [vmem:[#allocation5 + $0x34] sm:$0xf]
    %v64 = vld [vmem:[#allocation5 + $0x38] sm:$0xf]
    %v65 = vld [vmem:[#allocation5 + $0x3c] sm:$0xf]
    %v66 = vld [vmem:[#allocation5 + $0x40] sm:$0xf]
    %v67 = vld [vmem:[#allocation5 + $0x44] sm:$0xf]
    %v68 = vld [vmem:[#allocation5 + $0x48] sm:$0xf]
    %v69 = vld [vmem:[#allocation5 + $0x4c] sm:$0xf]
    %v70 = vld [vmem:[#allocation5 + $0x50] sm:$0xf]
    %v71 = vld [vmem:[#allocation5 + $0x54] sm:$0xf]
    %v72 = vld [vmem:[#allocation5 + $0x58] sm:$0xf]
    %v73 = vld [vmem:[#allocation5 + $0x5c] sm:$0xf]
    %v74 = vld [vmem:[#allocation5 + $0x60] sm:$0xf]
    %v75 = vld [vmem:[#allocation5 + $0x64] sm:$0xf]
    %v76 = vld [vmem:[#allocation5 + $0x68] sm:$0xf]
    %v77 = vld [vmem:[#allocation5 + $0x6c] sm:$0xf]
    %v78 = vld [vmem:[#allocation5 + $0x70] sm:$0xf]
    %v79 = vld [vmem:[#allocation5 + $0x74] sm:$0xf]
    %v80 = vld [vmem:[#allocation5 + $0x78] sm:$0xf]
    %v81 = vld [vmem:[#allocation5 + $0x7c] sm:$0xf]
    %v82 = vld [vmem:[%s2] sm:$0x1]
    %v84 = vlaneseq
    %v85 = vshrl.u32 %v84, 7
    %v86 = vsub.s32 0, %v85
    %v87 = vrot.slane %v82, %v86
    %v121 = vunpack.c.l.b16 %v50
    %v122 = vunpack.c.l.b16 %v51
    %v123 = vunpack.c.l.b16 %v52
    %v124 = vunpack.c.l.b16 %v53
    %v125 = vunpack.c.l.b16 %v54
    %v126 = vunpack.c.l.b16 %v55
    %v127 = vunpack.c.l.b16 %v56
    %v128 = vunpack.c.l.b16 %v57
    %v129 = vunpack.c.l.b16 %v58
    %v130 = vunpack.c.l.b16 %v59
    %v131 = vunpack.c.l.b16 %v60
    %v132 = vunpack.c.l.b16 %v61
    %v133 = vunpack.c.l.b16 %v62
    %v134 = vunpack.c.l.b16 %v63
    %v135 = vunpack.c.l.b16 %v64
    %v136 = vunpack.c.l.b16 %v65
    %v137 = vunpack.c.l.b16 %v66
    %v138 = vunpack.c.l.b16 %v67
    %v139 = vunpack.c.l.b16 %v68
    %v140 = vunpack.c.l.b16 %v69
    %v141 = vunpack.c.l.b16 %v70
    %v142 = vunpack.c.l.b16 %v71
    %v143 = vunpack.c.l.b16 %v72
    %v144 = vunpack.c.l.b16 %v73
    %v145 = vunpack.c.l.b16 %v74
    %v146 = vunpack.c.l.b16 %v75
    %v147 = vunpack.c.l.b16 %v76
    %v148 = vunpack.c.l.b16 %v77
    %v149 = vunpack.c.l.b16 %v78
    %v150 = vunpack.c.l.b16 %v79
    %v151 = vunpack.c.l.b16 %v80
    %v152 = vunpack.c.l.b16 %v81
    %v153 = vpack.c.b16 %v122, %v121
    %v154 = vpack.c.b16 %v124, %v123
    %v155 = vpack.c.b16 %v126, %v125
    %v156 = vpack.c.b16 %v128, %v127
    %v157 = vpack.c.b16 %v130, %v129
    %v158 = vpack.c.b16 %v132, %v131
    %v159 = vpack.c.b16 %v134, %v133
    %v160 = vpack.c.b16 %v136, %v135
    %v161 = vpack.c.b16 %v138, %v137
    %v162 = vpack.c.b16 %v140, %v139
    %v163 = vpack.c.b16 %v142, %v141
    %v164 = vpack.c.b16 %v144, %v143
    %v165 = vpack.c.b16 %v146, %v145
    %v166 = vpack.c.b16 %v148, %v147
    %v167 = vpack.c.b16 %v150, %v149
    %v168 = vpack.c.b16 %v152, %v151
    %185 = vmatprep.subr.bf16.mxu0 0
    %186 = vmatpush1.bf16.msra.mxu0 %v153
    %187 = vmatprep.subr.bf16.mxu0 0
    %188 = vmatpush1.bf16.msra.mxu0 %v154
    %189 = vmatprep.subr.bf16.mxu0 0
    %190 = vmatpush1.bf16.msra.mxu0 %v155
    %191 = vmatprep.subr.bf16.mxu0 0
    %192 = vmatpush1.bf16.msra.mxu0 %v156
    %193 = vmatprep.subr.bf16.mxu0 0
    %194 = vmatpush1.bf16.msra.mxu0 %v157
    %195 = vmatprep.subr.bf16.mxu0 0
    %196 = vmatpush1.bf16.msra.mxu0 %v158
    %197 = vmatprep.subr.bf16.mxu0 0
    %198 = vmatpush1.bf16.msra.mxu0 %v159
    %199 = vmatprep.subr.bf16.mxu0 0
    %200 = vmatpush1.bf16.msra.mxu0 %v160
    %201 = vmatprep.subr.bf16.mxu0 0
    %202 = vmatpush1.bf16.msra.mxu0 %v161
    %203 = vmatprep.subr.bf16.mxu0 0
    %204 = vmatpush1.bf16.msra.mxu0 %v162
    %205 = vmatprep.subr.bf16.mxu0 0
    %206 = vmatpush1.bf16.msra.mxu0 %v163
    %207 = vmatprep.subr.bf16.mxu0 0
    %208 = vmatpush1.bf16.msra.mxu0 %v164
    %209 = vmatprep.subr.bf16.mxu0 0
    %210 = vmatpush1.bf16.msra.mxu0 %v165
    %211 = vmatprep.subr.bf16.mxu0 0
    %212 = vmatpush1.bf16.msra.mxu0 %v166
    %213 = vmatprep.subr.bf16.mxu0 0
    %214 = vmatpush1.bf16.msra.mxu0 %v167
    %215 = vmatprep.subr.bf16.mxu0 0
    %216 = vmatpush1.bf16.msra.mxu0 %v168
    %217 = vmatprep.mubr.bf16.mxu0 %v49
    %218 = vmatmul.mubr.bf16.gmra.mrb[0].mxu0 %v48
    %v219 = vpop.f32.mrb[0].mxu0
    %v220 = vadd.f32 %v87, %v219
    %v221 = vpop.f32.mrb[0].mxu0
    %v222 = vpop.f32.mrb[0].mxu0
    %v223 = vadd.f32 %v87, %v222
    %v224 = vpop.f32.mrb[0].mxu0
    %225 = vdwg.mxu0
    %226 = vst [vmem:[#allocation7] sm:$0xff] %v220
    %227 = vst [vmem:[#allocation7 + $0x8] sm:$0xff] %v223
    // Predicated region
    $region22: #{tpu_custom_call.1} parent=1 // pred_check
      _
    $region23: #{tpu_custom_call.1} parent=1 // pred_check_branch
      %229 = sbr.rel (0) target = $region25
    $region24: #{tpu_custom_call.1} parent=1 // pred_region
      %s231 = ssub.s32 256, 256
      %232 = vsyncadd [#allocation4], %s231
      %s233 = sshll.u32 [#allocation7], 4
      %s234 = int_to_ptr.vmem [resolvable:$true] %s233
      %239 = dma.vmem_to_hbm [thread:$0]  %s234, 256, %s3, [#allocation4], 128, 128, 8
    $region25: #{tpu_custom_call.1} parent=1 // pred_fallthru
      _
    // Predicated region
    $region26: #{tpu_custom_call.1} parent=1 // pred_check
      _
    $region27: #{tpu_custom_call.1} parent=1 // pred_check_branch
      %241 = sbr.rel (0) target = $region29
    $region28: #{tpu_custom_call.1} parent=1 // pred_region
      %242 = dma.done [#allocation4], 256
    $region29: #{tpu_custom_call.1} parent=1 // pred_fallthru
      _
    %243 = vsyncpa [#allocation3], 1
    %244 = vsyncpa [#allocation6], 1
    %245 = vsyncpa [#allocation4], 1

// kernel: tpu_custom_call.1
$region0: #{tpu_custom_call.1}
  #allocation0 [shape = 'u32[]', space=smem, size = 0x4, offset = 0x4, fixed_abs, tag = 'smem constant byte address 0x4 - core index']
  #allocation1 [shape = 'u32[144,128]{1,0:T(1,128)}', space=vmem, size = 0x12000, scoped, tag = 'internal scratch']
  %s0 = inlined_call_operand.hbm [shape: f32[16,256], index: 0, kind: input, shape index: {}]
  %s1 = inlined_call_operand.hbm [shape: bf16[256,128], index: 1, kind: input, shape index: {}]
  %s2 = inlined_call_operand.vmem [shape: f32[1,128], index: 2, kind: input, shape index: {}]
  %s3 = inlined_call_operand.hbm [shape: f32[16,128], index: 3, kind: output, shape index: {}]
  %s4 = sld [smem:[#allocation0]]
  $region30: #{tpu_custom_call.1} parent=0
    _
  %s6 = ssub.s32 1, %s4
  %s7 = scalar_select 0, %s6, %s4
  $region1: #{tpu_custom_call.1} parent=0
    #allocation2 [shape = 'u8[16384]{0}', space=vmem, size = 0x4000, scoped, tag = 'input window, operand 0, single buffered']
    #allocation3 [shape = 's32[1]{0}', space=sflag, size = 0x4, scoped, tag = 'scoped memory for tpu_custom_call.1']
    #allocation4 [shape = 's32[1]{0}', space=sflag, size = 0x4, scoped, tag = 'scoped memory for tpu_custom_call.1']
    #allocation5 [shape = 'u8[65536]{0}', space=vmem, size = 0x10000, scoped, tag = 'input window, operand 1, single buffered']
    #allocation6 [shape = 's32[1]{0}', space=sflag, size = 0x4, scoped, tag = 'scoped memory for tpu_custom_call.1']
    #allocation7 [shape = 'u8[8192]{0}', space=vmem, size = 0x2000, scoped, tag = 'output window, operand 0, single buffered']
    %8 = vsyncpa [#allocation3], 0
    %9 = vsyncpa [#allocation6], 0
    %10 = vsyncpa [#allocation4], 0
    // Predicated region
    $region2: #{tpu_custom_call.1} parent=1 // pred_check
      _
    $region3: #{tpu_custom_call.1} parent=1 // pred_check_branch
      %12 = sbr.rel (0) target = $region5
    $region4: #{tpu_custom_call.1} parent=1 // pred_region
      %s14 = ssub.s32 512, 512
      %15 = vsyncadd [#allocation3], %s14
      %s16 = sshll.u32 [#allocation2], 4
      %s17 = int_to_ptr.vmem [resolvable:$true] %s16
      %22 = dma.hbm_to_vmem [thread:$0]  %s0, 512, %s17, [#allocation3], 256, 256, 16
    $region5: #{tpu_custom_call.1} parent=1 // pred_fallthru
      _
    // Predicated region
    $region6: #{tpu_custom_call.1} parent=1 // pred_check
      _
    $region7: #{tpu_custom_call.1} parent=1 // pred_check_branch
      %24 = sbr.rel (0) target = $region9
    $region8: #{tpu_custom_call.1} parent=1 // pred_region
      %s26 = ssub.s32 2048, 2048
      %27 = vsyncadd [#allocation6], %s26
      %s28 = sshll.u32 [#allocation5], 4
      %s29 = int_to_ptr.vmem [resolvable:$true] %s28
      %34 = dma.hbm_to_vmem [thread:$0]  %s1, 2048, %s29, [#allocation6], 64, 64, 4
    $region9: #{tpu_custom_call.1} parent=1 // pred_fallthru
      _
    // Predicated region
    $region10: #{tpu_custom_call.1} parent=1 // pred_check
      _
    $region11: #{tpu_custom_call.1} parent=1 // pred_check_branch
      %36 = sbr.rel (0) target = $region13
    $region12: #{tpu_custom_call.1} parent=1 // pred_region
      _
    $region13: #{tpu_custom_call.1} parent=1 // pred_fallthru
      _
    // Predicated region
    $region14: #{tpu_custom_call.1} parent=1 // pred_check
      _
    $region15: #{tpu_custom_call.1} parent=1 // pred_check_branch
      %38 = sbr.rel (0) target = $region17
    $region16: #{tpu_custom_call.1} parent=1 // pred_region
      %39 = dma.done [#allocation3], 512
    $region17: #{tpu_custom_call.1} parent=1 // pred_fallthru
      _
    // Predicated region
    $region18: #{tpu_custom_call.1} parent=1 // pred_check
      _
    $region19: #{tpu_custom_call.1} parent=1 // pred_check_branch
      %41 = sbr.rel (0) target = $region21
    $region20: #{tpu_custom_call.1} parent=1 // pred_region
      %42 = dma.done [#allocation6], 2048
    $region21: #{tpu_custom_call.1} parent=1 // pred_fallthru
      _
    %v44 = vld [vmem:[#allocation2] sm:$0xff]
    %v45 = vld [vmem:[#allocation2 + $0x8] sm:$0xff]
    %v46 = vld [vmem:[#allocation2 + $0x10] sm:$0xff]
    %v47 = vld [vmem:[#allocation2 + $0x18] sm:$0xff]
    %v48 = vpack.c.bf16 %v46, %v44
    %v49 = vpack.c.bf16 %v47, %v45
    %v50 = vld [vmem:[#allocation5] sm:$0xf]
    %v51 = vld [vmem:[#allocation5 + $0x4] sm:$0xf]
    %v52 = vld [vmem:[#allocation5 + $0x8] sm:$0xf]
    %v53 = vld [vmem:[#allocation5 + $0xc] sm:$0xf]
    %v54 = vld [vmem:[#allocation5 + $0x10] sm:$0xf]
    %v55 = vld [vmem:[#allocation5 + $0x14] sm:$0xf]
    %v56 = vld [vmem:[#allocation5 + $0x18] sm:$0xf]
    %v57 = vld [vmem:[#allocation5 + $0x1c] sm:$0xf]
    %v58 = vld [vmem:[#allocation5 + $0x20] sm:$0xf]
    %v59 = vld [vmem:[#allocation5 + $0x24] sm:$0xf]
    %v60 = vld [vmem:[#allocation5 + $0x28] sm:$0xf]
    %v61 = vld [vmem:[#allocation5 + $0x2c] sm:$0xf]
    %v62 = vld [vmem:[#allocation5 + $0x30] sm:$0xf]
    %v63 = vld [vmem:[#allocation5 + $0x34] sm:$0xf]
    %v64 = vld [vmem:[#allocation5 + $0x38] sm:$0xf]
    %v65 = vld [vmem:[#allocation5 + $0x3c] sm:$0xf]
    %v66 = vld [vmem:[#allocation5 + $0x40] sm:$0xf]
    %v67 = vld [vmem:[#allocation5 + $0x44] sm:$0xf]
    %v68 = vld [vmem:[#allocation5 + $0x48] sm:$0xf]
    %v69 = vld [vmem:[#allocation5 + $0x4c] sm:$0xf]
    %v70 = vld [vmem:[#allocation5 + $0x50] sm:$0xf]
    %v71 = vld [vmem:[#allocation5 + $0x54] sm:$0xf]
    %v72 = vld [vmem:[#allocation5 + $0x58] sm:$0xf]
    %v73 = vld [vmem:[#allocation5 + $0x5c] sm:$0xf]
    %v74 = vld [vmem:[#allocation5 + $0x60] sm:$0xf]
    %v75 = vld [vmem:[#allocation5 + $0x64] sm:$0xf]
    %v76 = vld [vmem:[#allocation5 + $0x68] sm:$0xf]
    %v77 = vld [vmem:[#allocation5 + $0x6c] sm:$0xf]
    %v78 = vld [vmem:[#allocation5 + $0x70] sm:$0xf]
    %v79 = vld [vmem:[#allocation5 + $0x74] sm:$0xf]
    %v80 = vld [vmem:[#allocation5 + $0x78] sm:$0xf]
    %v81 = vld [vmem:[#allocation5 + $0x7c] sm:$0xf]
    %v82 = vld [vmem:[%s2] sm:$0x1]
    %v84 = vlaneseq
    %v85 = vshrl.u32 %v84, 7
    %v86 = vsub.s32 0, %v85
    %v87 = vrot.slane %v82, %v86
    %v121 = vunpack.c.l.b16 %v50
    %v122 = vunpack.c.l.b16 %v51
    %v123 = vunpack.c.l.b16 %v52
    %v124 = vunpack.c.l.b16 %v53
    %v125 = vunpack.c.l.b16 %v54
    %v126 = vunpack.c.l.b16 %v55
    %v127 = vunpack.c.l.b16 %v56
    %v128 = vunpack.c.l.b16 %v57
    %v129 = vunpack.c.l.b16 %v58
    %v130 = vunpack.c.l.b16 %v59
    %v131 = vunpack.c.l.b16 %v60
    %v132 = vunpack.c.l.b16 %v61
    %v133 = vunpack.c.l.b16 %v62
    %v134 = vunpack.c.l.b16 %v63
    %v135 = vunpack.c.l.b16 %v64
    %v136 = vunpack.c.l.b16 %v65
    %v137 = vunpack.c.l.b16 %v66
    %v138 = vunpack.c.l.b16 %v67
    %v139 = vunpack.c.l.b16 %v68
    %v140 = vunpack.c.l.b16 %v69
    %v141 = vunpack.c.l.b16 %v70
    %v142 = vunpack.c.l.b16 %v71
    %v143 = vunpack.c.l.b16 %v72
    %v144 = vunpack.c.l.b16 %v73
    %v145 = vunpack.c.l.b16 %v74
    %v146 = vunpack.c.l.b16 %v75
    %v147 = vunpack.c.l.b16 %v76
    %v148 = vunpack.c.l.b16 %v77
    %v149 = vunpack.c.l.b16 %v78
    %v150 = vunpack.c.l.b16 %v79
    %v151 = vunpack.c.l.b16 %v80
    %v152 = vunpack.c.l.b16 %v81
    %v153 = vpack.c.b16 %v122, %v121
    %v154 = vpack.c.b16 %v124, %v123
    %v155 = vpack.c.b16 %v126, %v125
    %v156 = vpack.c.b16 %v128, %v127
    %v157 = vpack.c.b16 %v130, %v129
    %v158 = vpack.c.b16 %v132, %v131
    %v159 = vpack.c.b16 %v134, %v133
    %v160 = vpack.c.b16 %v136, %v135
    %v161 = vpack.c.b16 %v138, %v137
    %v162 = vpack.c.b16 %v140, %v139
    %v163 = vpack.c.b16 %v142, %v141
    %v164 = vpack.c.b16 %v144, %v143
    %v165 = vpack.c.b16 %v146, %v145
    %v166 = vpack.c.b16 %v148, %v147
    %v167 = vpack.c.b16 %v150, %v149
    %v168 = vpack.c.b16 %v152, %v151
    %185 = vmatprep.subr.bf16.mxu0 0
    %186 = vmatpush1.bf16.msra.mxu0 %v153
    %187 = vmatprep.subr.bf16.mxu0 0
    %188 = vmatpush1.bf16.msra.mxu0 %v154
    %189 = vmatprep.subr.bf16.mxu0 0
    %190 = vmatpush1.bf16.msra.mxu0 %v155
    %191 = vmatprep.subr.bf16.mxu0 0
    %192 = vmatpush1.bf16.msra.mxu0 %v156
    %193 = vmatprep.subr.bf16.mxu0 0
    %194 = vmatpush1.bf16.msra.mxu0 %v157
    %195 = vmatprep.subr.bf16.mxu0 0
    %196 = vmatpush1.bf16.msra.mxu0 %v158
    %197 = vmatprep.subr.bf16.mxu0 0
    %198 = vmatpush1.bf16.msra.mxu0 %v159
    %199 = vmatprep.subr.bf16.mxu0 0
    %200 = vmatpush1.bf16.msra.mxu0 %v160
    %201 = vmatprep.subr.bf16.mxu0 0
    %202 = vmatpush1.bf16.msra.mxu0 %v161
    %203 = vmatprep.subr.bf16.mxu0 0
    %204 = vmatpush1.bf16.msra.mxu0 %v162
    %205 = vmatprep.subr.bf16.mxu0 0
    %206 = vmatpush1.bf16.msra.mxu0 %v163
    %207 = vmatprep.subr.bf16.mxu0 0
    %208 = vmatpush1.bf16.msra.mxu0 %v164
    %209 = vmatprep.subr.bf16.mxu0 0
    %210 = vmatpush1.bf16.msra.mxu0 %v165
    %211 = vmatprep.subr.bf16.mxu0 0
    %212 = vmatpush1.bf16.msra.mxu0 %v166
    %213 = vmatprep.subr.bf16.mxu0 0
    %214 = vmatpush1.bf16.msra.mxu0 %v167
    %215 = vmatprep.subr.bf16.mxu0 0
    %216 = vmatpush1.bf16.msra.mxu0 %v168
    %217 = vmatprep.mubr.bf16.mxu0 %v49
    %218 = vmatmul.mubr.bf16.gmra.mrb[0].mxu0 %v48
    %v219 = vpop.f32.mrb[0].mxu0
    %v220 = vadd.f32 %v87, %v219
    %v221 = vpop.f32.mrb[0].mxu0
    %v222 = vpop.f32.mrb[0].mxu0
    %v223 = vadd.f32 %v87, %v222
    %v224 = vpop.f32.mrb[0].mxu0
    %225 = vdwg.mxu0
    %226 = vst [vmem:[#allocation7] sm:$0xff] %v220
    %227 = vst [vmem:[#allocation7 + $0x8] sm:$0xff] %v223
    // Predicated region
    $region22: #{tpu_custom_call.1} parent=1 // pred_check
      _
    $region23: #{tpu_custom_call.1} parent=1 // pred_check_branch
      %229 = sbr.rel (0) target = $region25
    $region24: #{tpu_custom_call.1} parent=1 // pred_region
      %s231 = ssub.s32 256, 256
      %232 = vsyncadd [#allocation4], %s231
      %s233 = sshll.u32 [#allocation7], 4
      %s234 = int_to_ptr.vmem [resolvable:$true] %s233
      %239 = dma.vmem_to_hbm [thread:$0]  %s234, 256, %s3, [#allocation4], 128, 128, 8
    $region25: #{tpu_custom_call.1} parent=1 // pred_fallthru
      _
    // Predicated region
    $region26: #{tpu_custom_call.1} parent=1 // pred_check
      _
    $region27: #{tpu_custom_call.1} parent=1 // pred_check_branch
      %241 = sbr.rel (0) target = $region29
    $region28: #{tpu_custom_call.1} parent=1 // pred_region
      %242 = dma.done [#allocation4], 256
    $region29: #{tpu_custom_call.1} parent=1 // pred_fallthru
      _
    %243 = vsyncpa [#allocation3], 1
    %244 = vsyncpa [#allocation6], 1
    %245 = vsyncpa [#allocation4], 1

</llo_original>
